<compile_context>
chip_gen: v5e
topology: v5e:2x2
jax: 0.10.0
libtpu: 0.0.40
codegen_flags: <defaults>
</compile_context>

<pallas_src>
import functools
import math

import jax
import jax.numpy as jnp
from jax import lax
from jax.experimental import pallas as pl
from jax.experimental.pallas import tpu as pltpu

_LANES = 128      # vreg lane width (last-dim tiling unit)
_SUBLANES = 8     # vreg sublane count (second-to-last-dim tiling unit)


def _round_up(x: int, m: int) -> int:
    return ((x + m - 1) // m) * m


def _cdiv(a: int, b: int) -> int:
    return (a + b - 1) // b


def _choose_tiling(t, f, itemsize, target_bytes, max_rows=256):
    """Pick (tt, tf).

    tt: rows per tile, multiple of 8, capped at `max_rows` so the per-row
        accumulator (tt x 128 f32) stays <= half the 64-vreg file.
    tf: features per tile, multiple of 128, sized so one input block is
        about `target_bytes` (never wider than the lane-rounded F).
    """
    tt = min(max_rows, _round_up(t, _SUBLANES))
    # Guarantee >= 2 parallel T chunks when possible (lets v7x's second
    # TensorCore participate); no-op for tiny T like T == 8.
    if _cdiv(t, tt) < 2:
        half = _round_up(_cdiv(t, 2), _SUBLANES)
        if half < tt:
            tt = half
    f_aligned = _round_up(f, _LANES)
    tf_budget = max(_LANES, (target_bytes // (tt * itemsize)) // _LANES * _LANES)
    tf = min(f_aligned, tf_budget)
    return tt, tf


def _time_decay_mse_kernel(x_ref, y_ref, o_ref, acc_ref, *,
                           decay_factor: float, t_true: int, f_true: int,
                           tt: int, tf: int, n_ft: int,
                           mask_rows: bool, mask_cols: bool):
    # Grid: (T-chunks [parallel], feature tiles [arbitrary / reduction]).
    # NOTE: program_id must be queried at the top level of the body (never
    # inside a pl.when body) or lowering fails.
    i = pl.program_id(0)
    j = pl.program_id(1)
    j_last = n_ft - 1                 # static

    @pl.when(j == 0)
    def _init():
        acc_ref[...] = jnp.zeros_like(acc_ref)

    # Hot path: per 128-lane tile, fused (x - y)^2 accumulated into a
    # register-resident (tt, 128) partial sum; a single add into the VMEM
    # accumulator at the end.  Pure VPU work, no XLU reduce, no full-width
    # f32 temporaries.
    n_lane_tiles = tf // _LANES
    lane = (lax.broadcasted_iota(jnp.int32, (tt, _LANES), 1)
            if mask_cols else None)
    col_base = j * tf

    part = None
    for k in range(n_lane_tiles):
        lo = k * _LANES
        xs = x_ref[:, lo:lo + _LANES].astype(jnp.float32)
        ys = y_ref[:, lo:lo + _LANES].astype(jnp.float32)
        d = xs - ys
        if mask_cols:
            # Zero out lanes past the true feature count (partial last block;
            # out-of-bounds VMEM contents are unspecified).
            d = jnp.where(col_base + lo + lane < f_true, d, jnp.float32(0.0))
        sq = d * d
        part = sq if part is None else part + sq
    acc_ref[...] += part

    # Finalize on the last feature tile: cross-lane reduce, per-row mean,
    # time-decay weight, decay-weighted partial sum for this T-chunk.
    @pl.when(j == j_last)
    def _finalize():
        row_sum = jnp.sum(acc_ref[...], axis=1, keepdims=True)        # (tt, 1)
        per_row = row_sum * jnp.float32(1.0 / f_true)                 # loss[t]
        row_idx = lax.broadcasted_iota(jnp.int32, (tt, 1), 0) + i * tt
        expo = (row_idx + 1).astype(jnp.float32)                      # t + 1
        if decay_factor > 0.0:
            decay = jnp.exp(expo * jnp.float32(math.log(decay_factor)))
        else:
            decay = jnp.power(jnp.float32(decay_factor), expo)
        weighted = per_row * decay
        if mask_rows:
            # Drop rows past the true time length (partial last T chunk).
            weighted = jnp.where(row_idx < t_true, weighted, jnp.float32(0.0))
        chunk = jnp.sum(weighted)                                     # scalar
        # Lane-dense (1, 8, 128) output tile; the wrapper reads [i, 0, 0].
        o_ref[...] = jnp.broadcast_to(chunk, o_ref.shape).astype(jnp.float32)


def time_decay_mse_loss(inp, tgt, *, decay_factor: float = 0.99,
                        target_block_bytes: int = 8 * 1024 * 1024,
                        max_rows_per_tile: int = 256):
    """inp/tgt: arrays with leading time axis; flattened like PyTorch .view(T, -1)."""
    assert inp.shape == tgt.shape
    t = inp.shape[0]
    # Flatten like the PyTorch .view(T, -1) and KEEP the input dtype — no f32
    # upcast in HBM (the kernel accumulates in f32 internally).
    x = inp.reshape(t, -1)
    y = tgt.reshape(t, -1)
    f = x.shape[1]
    itemsize = jnp.dtype(x.dtype).itemsize

    # Keep 2 inputs x 2 buffers (+ headroom) under ~48 MiB for v7x's 64 MiB VMEM.
    target_block_bytes = min(int(target_block_bytes), 9 * 1024 * 1024)

    tt, tf = _choose_tiling(t, f, itemsize, target_block_bytes, max_rows_per_tile)
    n_tc = _cdiv(t, tt)         # parallel T chunks
    n_ft = _cdiv(f, tf)         # feature-reduction tiles
    mask_rows = (t % tt) != 0   # partial last T chunk handled in-kernel
    mask_cols = (f % tf) != 0   # partial last feature tile handled in-kernel

    kernel = functools.partial(
        _time_decay_mse_kernel,
        decay_factor=float(decay_factor), t_true=t, f_true=f,
        tt=tt, tf=tf, n_ft=n_ft, mask_rows=mask_rows, mask_cols=mask_cols)

    block_bytes = tt * tf * itemsize
    # Real footprint: 2 inputs x 2 pipeline buffers x block + acc scratch
    # + double-buffered output, plus 25% headroom; capped at 48 MiB (v7x).
    need = 4 * block_bytes + tt * _LANES * 4 + 2 * _SUBLANES * _LANES * 4
    vmem_limit = int(min(48 * 1024 * 1024,
                         max(16 * 1024 * 1024, int(need * 1.25))))

    partials = pl.pallas_call(
        kernel,
        out_shape=jax.ShapeDtypeStruct((n_tc, _SUBLANES, _LANES), jnp.float32),
        grid_spec=pltpu.PrefetchScalarGridSpec(
            num_scalar_prefetch=0,
            grid=(n_tc, n_ft),
            in_specs=[
                pl.BlockSpec((tt, tf), lambda i, j: (i, j)),
                pl.BlockSpec((tt, tf), lambda i, j: (i, j)),
            ],
            out_specs=pl.BlockSpec((1, _SUBLANES, _LANES),
                                   lambda i, j: (i, 0, 0)),
            scratch_shapes=[pltpu.VMEM((tt, _LANES), jnp.float32)],
        ),
        compiler_params=pltpu.CompilerParams(
            dimension_semantics=("parallel", "arbitrary"),
            vmem_limit_bytes=vmem_limit),
    )(x, y)

    # Per-chunk decay-weighted sums -> mean over the true time length.
    return jnp.sum(partials[:, 0, 0]) / jnp.float32(t)


def _reference(inp, tgt, decay_factor=0.99):
    t = inp.shape[0]
    x = inp.reshape(t, -1).astype(jnp.float32)
    y = tgt.reshape(t, -1).astype(jnp.float32)
    loss = jnp.mean((x - y) ** 2, axis=1)
    decay = jnp.cumprod(jnp.full_like(loss, decay_factor))
    return jnp.mean(loss * decay)


if __name__ == "__main__":
    key = jax.random.PRNGKey(0)
    k1, k2, k3, k4 = jax.random.split(key, 4)

    # Case 1: typical use -- [T, ...] tensors, f32, lane-aligned F.
    shape = (8, 4, 16, 16)                                  # T=8, F=1024
    inp = jax.random.normal(k1, shape, dtype=jnp.float32)
    tgt = jax.random.normal(k2, shape, dtype=jnp.float32)
    out = jax.block_until_ready(time_decay_mse_loss(inp, tgt, decay_factor=0.99))
    ref = _reference(inp, tgt, 0.99)
    assert jnp.allclose(out, ref, rtol=2e-5, atol=2e-6), (out, ref)

    # Case 2: bf16 inputs streamed at half the HBM traffic (f32 accumulation).
    inp_bf = inp.astype(jnp.bfloat16)
    tgt_bf = tgt.astype(jnp.bfloat16)
    out_bf = jax.block_until_ready(
        time_decay_mse_loss(inp_bf, tgt_bf, decay_factor=0.99))
    ref_bf = _reference(inp_bf, tgt_bf, 0.99)
    assert jnp.allclose(out_bf, ref_bf, rtol=2e-5, atol=2e-6), (out_bf, ref_bf)

    # Case 3: force the tiled path (2 parallel T chunks + feature-tile reduction).
    shape3 = (16, 4, 16, 16)                                # T=16, F=1024
    a = jax.random.normal(k3, shape3, dtype=jnp.float32)
    b = jax.random.normal(k4, shape3, dtype=jnp.float32)
    out3 = jax.block_until_ready(
        time_decay_mse_loss(a, b, decay_factor=0.97,
                            target_block_bytes=8 * 1024))
    ref3 = _reference(a, b, 0.97)
    assert jnp.allclose(out3, ref3, rtol=2e-5, atol=2e-6), (out3, ref3)

    # Case 4: lane-unaligned F and T not a multiple of the row tile
    # (partial blocks masked inside the kernel; no wrapper padding).
    shape4 = (10, 3, 7, 5)                                  # T=10, F=105
    c = jax.random.normal(k1, shape4, dtype=jnp.float32)
    d = jax.random.normal(k2, shape4, dtype=jnp.float32)
    out4 = jax.block_until_ready(time_decay_mse_loss(c, d, decay_factor=0.95))
    ref4 = _reference(c, d, 0.95)
    assert jnp.allclose(out4, ref4, rtol=2e-5, atol=2e-6), (out4, ref4)

    print("KERNEL_OK")
</pallas_src>

<mosaic_0001>
module attributes {stable_mosaic.version = 11 : i64} {
  func.func @_time_decay_mse_kernel(%arg0: i32, %arg1: i32, %arg2: memref<8x1024xf32, #tpu.memory_space<vmem>>, %arg3: memref<8x1024xf32, #tpu.memory_space<vmem>>, %arg4: memref<1x8x128xf32, #tpu.memory_space<vmem>>, %arg5: memref<8x128xf32, #tpu.memory_space<vmem>>) attributes {dimension_semantics = [#tpu.dimension_semantics<parallel>, #tpu.dimension_semantics<arbitrary>], iteration_bounds = array<i64: 1, 1>, scalar_prefetch = 0 : i64, scratch_operands = 1 : i64, tpu.core_type = #tpu.core_type<tc>, window_params = [{transform_indices = @transform_0, window_bounds = array<i64: 8, 1024>}, {transform_indices = @transform_1, window_bounds = array<i64: 8, 1024>}, {transform_indices = @transform_2, window_bounds = array<i64: 1, 8, 128>}]} {
    %c0_i32 = arith.constant 0 : i32
    %0 = arith.cmpi eq, %arg1, %c0_i32 : i32
    %1 = arith.extui %0 : i1 to i32
    %c0_i32_0 = arith.constant 0 : i32
    %2 = arith.cmpi ne, %1, %c0_i32_0 : i32
    scf.if %2 {
      %cst = arith.constant 0.000000e+00 : f32
      %48 = vector.broadcast %cst : f32 to vector<8x128xf32>
      %c0_31 = arith.constant 0 : index
      %c0_32 = arith.constant 0 : index
      %49 = vector.load %arg5[%c0_31, %c0_32] : memref<8x128xf32, #tpu.memory_space<vmem>>, vector<8x128xf32>
      tpu.vector_store %arg5[%c0_31, %c0_32], %48 {strides = array<i32>} : memref<8x128xf32, #tpu.memory_space<vmem>>, vector<8x128xf32>,
    } else {
    }
    %c0 = arith.constant 0 : index
    %c0_1 = arith.constant 0 : index
    %3 = vector.load %arg2[%c0, %c0_1] : memref<8x1024xf32, #tpu.memory_space<vmem>>, vector<8x128xf32>
    %c0_2 = arith.constant 0 : index
    %c0_3 = arith.constant 0 : index
    %4 = vector.load %arg3[%c0_2, %c0_3] : memref<8x1024xf32, #tpu.memory_space<vmem>>, vector<8x128xf32>
    %5 = arith.subf %3, %4 : vector<8x128xf32>
    %6 = arith.mulf %5, %5 : vector<8x128xf32>
    %c0_4 = arith.constant 0 : index
    %c128 = arith.constant 128 : index
    %7 = vector.load %arg2[%c0_4, %c128] : memref<8x1024xf32, #tpu.memory_space<vmem>>, vector<8x128xf32>
    %c0_5 = arith.constant 0 : index
    %c128_6 = arith.constant 128 : index
    %8 = vector.load %arg3[%c0_5, %c128_6] : memref<8x1024xf32, #tpu.memory_space<vmem>>, vector<8x128xf32>
    %9 = arith.subf %7, %8 : vector<8x128xf32>
    %10 = arith.mulf %9, %9 : vector<8x128xf32>
    %11 = arith.addf %6, %10 : vector<8x128xf32>
    %c0_7 = arith.constant 0 : index
    %c256 = arith.constant 256 : index
    %12 = vector.load %arg2[%c0_7, %c256] : memref<8x1024xf32, #tpu.memory_space<vmem>>, vector<8x128xf32>
    %c0_8 = arith.constant 0 : index
    %c256_9 = arith.constant 256 : index
    %13 = vector.load %arg3[%c0_8, %c256_9] : memref<8x1024xf32, #tpu.memory_space<vmem>>, vector<8x128xf32>
    %14 = arith.subf %12, %13 : vector<8x128xf32>
    %15 = arith.mulf %14, %14 : vector<8x128xf32>
    %16 = arith.addf %11, %15 : vector<8x128xf32>
    %c0_10 = arith.constant 0 : index
    %c384 = arith.constant 384 : index
    %17 = vector.load %arg2[%c0_10, %c384] : memref<8x1024xf32, #tpu.memory_space<vmem>>, vector<8x128xf32>
    %c0_11 = arith.constant 0 : index
    %c384_12 = arith.constant 384 : index
    %18 = vector.load %arg3[%c0_11, %c384_12] : memref<8x1024xf32, #tpu.memory_space<vmem>>, vector<8x128xf32>
    %19 = arith.subf %17, %18 : vector<8x128xf32>
    %20 = arith.mulf %19, %19 : vector<8x128xf32>
    %21 = arith.addf %16, %20 : vector<8x128xf32>
    %c0_13 = arith.constant 0 : index
    %c512 = arith.constant 512 : index
    %22 = vector.load %arg2[%c0_13, %c512] : memref<8x1024xf32, #tpu.memory_space<vmem>>, vector<8x128xf32>
    %c0_14 = arith.constant 0 : index
    %c512_15 = arith.constant 512 : index
    %23 = vector.load %arg3[%c0_14, %c512_15] : memref<8x1024xf32, #tpu.memory_space<vmem>>, vector<8x128xf32>
    %24 = arith.subf %22, %23 : vector<8x128xf32>
    %25 = arith.mulf %24, %24 : vector<8x128xf32>
    %26 = arith.addf %21, %25 : vector<8x128xf32>
    %c0_16 = arith.constant 0 : index
    %c640 = arith.constant 640 : index
    %27 = vector.load %arg2[%c0_16, %c640] : memref<8x1024xf32, #tpu.memory_space<vmem>>, vector<8x128xf32>
    %c0_17 = arith.constant 0 : index
    %c640_18 = arith.constant 640 : index
    %28 = vector.load %arg3[%c0_17, %c640_18] : memref<8x1024xf32, #tpu.memory_space<vmem>>, vector<8x128xf32>
    %29 = arith.subf %27, %28 : vector<8x128xf32>
    %30 = arith.mulf %29, %29 : vector<8x128xf32>
    %31 = arith.addf %26, %30 : vector<8x128xf32>
    %c0_19 = arith.constant 0 : index
    %c768 = arith.constant 768 : index
    %32 = vector.load %arg2[%c0_19, %c768] : memref<8x1024xf32, #tpu.memory_space<vmem>>, vector<8x128xf32>
    %c0_20 = arith.constant 0 : index
    %c768_21 = arith.constant 768 : index
    %33 = vector.load %arg3[%c0_20, %c768_21] : memref<8x1024xf32, #tpu.memory_space<vmem>>, vector<8x128xf32>
    %34 = arith.subf %32, %33 : vector<8x128xf32>
    %35 = arith.mulf %34, %34 : vector<8x128xf32>
    %36 = arith.addf %31, %35 : vector<8x128xf32>
    %c0_22 = arith.constant 0 : index
    %c896 = arith.constant 896 : index
    %37 = vector.load %arg2[%c0_22, %c896] : memref<8x1024xf32, #tpu.memory_space<vmem>>, vector<8x128xf32>
    %c0_23 = arith.constant 0 : index
    %c896_24 = arith.constant 896 : index
    %38 = vector.load %arg3[%c0_23, %c896_24] : memref<8x1024xf32, #tpu.memory_space<vmem>>, vector<8x128xf32>
    %39 = arith.subf %37, %38 : vector<8x128xf32>
    %40 = arith.mulf %39, %39 : vector<8x128xf32>
    %41 = arith.addf %36, %40 : vector<8x128xf32>
    %c0_25 = arith.constant 0 : index
    %c0_26 = arith.constant 0 : index
    %42 = vector.load %arg5[%c0_25, %c0_26] : memref<8x128xf32, #tpu.memory_space<vmem>>, vector<8x128xf32>
    %43 = arith.addf %42, %41 : vector<8x128xf32>
    %c0_27 = arith.constant 0 : index
    %c0_28 = arith.constant 0 : index
    %44 = vector.load %arg5[%c0_27, %c0_28] : memref<8x128xf32, #tpu.memory_space<vmem>>, vector<8x128xf32>
    tpu.vector_store %arg5[%c0_27, %c0_28], %43 {strides = array<i32>} : memref<8x128xf32, #tpu.memory_space<vmem>>, vector<8x128xf32>,
    %c0_i32_29 = arith.constant 0 : i32
    %45 = arith.cmpi eq, %arg1, %c0_i32_29 : i32
    %46 = arith.extui %45 : i1 to i32
    %c0_i32_30 = arith.constant 0 : i32
    %47 = arith.cmpi ne, %46, %c0_i32_30 : i32
    scf.if %47 {
      %c0_31 = arith.constant 0 : index
      %c0_32 = arith.constant 0 : index
      %48 = vector.load %arg5[%c0_31, %c0_32] : memref<8x128xf32, #tpu.memory_space<vmem>>, vector<8x128xf32>
      %cst = arith.constant dense<0.000000e+00> : vector<8xf32>
      %49 = vector.multi_reduction <add>, %48, %cst [1] : vector<8x128xf32> to vector<8xf32>
      %50 = vector.shape_cast %49 : vector<8xf32> to vector<8x1xf32>
      %cst_33 = arith.constant 9.765625E-4 : f32
      %51 = vector.broadcast %cst_33 : f32 to vector<8x1xf32>
      %52 = arith.mulf %50, %51 : vector<8x1xf32>
      %53 = tpu.iota {dimensions = array<i32: 0>} : vector<8x1xi32>
      %c8_i32 = arith.constant 8 : i32
      %54 = arith.muli %arg0, %c8_i32 : i32
      %55 = vector.broadcast %54 : i32 to vector<8x1xi32>
      %56 = arith.addi %53, %55 : vector<8x1xi32>
      %c1_i32 = arith.constant 1 : i32
      %57 = vector.broadcast %c1_i32 : i32 to vector<8x1xi32>
      %58 = arith.addi %56, %57 : vector<8x1xi32>
      %59 = arith.sitofp %58 : vector<8x1xi32> to vector<8x1xf32>
      %cst_34 = arith.constant -0.0100503359 : f32
      %60 = vector.broadcast %cst_34 : f32 to vector<8x1xf32>
      %61 = arith.mulf %59, %60 : vector<8x1xf32>
      %62 = math.exp %61 : vector<8x1xf32>
      %63 = arith.mulf %52, %62 : vector<8x1xf32>
      %64 = vector.shape_cast %63 : vector<8x1xf32> to vector<1x8x1xf32>
      %cst_35 = arith.constant dense<0.000000e+00> : vector<1xf32>
      %65 = vector.multi_reduction <add>, %64, %cst_35 [1, 2] : vector<1x8x1xf32> to vector<1xf32>
      %66 = vector.shape_cast %65 : vector<1xf32> to vector<1x1x1xf32>
      %67 = vector.extract %66[0, 0, 0] : f32 from vector<1x1x1xf32>
      %68 = vector.broadcast %67 : f32 to vector<1x8x128xf32>
      %c0_36 = arith.constant 0 : index
      %c0_37 = arith.constant 0 : index
      %c0_38 = arith.constant 0 : index
      %69 = vector.load %arg4[%c0_36, %c0_37, %c0_38] : memref<1x8x128xf32, #tpu.memory_space<vmem>>, vector<1x8x128xf32>
      tpu.vector_store %arg4[%c0_36, %c0_37, %c0_38], %68 {strides = array<i32>} : memref<1x8x128xf32, #tpu.memory_space<vmem>>, vector<1x8x128xf32>,
    } else {
    }
    return
  }
  func.func @transform_0(%arg0: i32, %arg1: i32) -> (i32, i32) {
    %c0_i32 = arith.constant 0 : i32
    return %arg0, %arg1 : i32, i32
  }
  func.func @transform_1(%arg0: i32, %arg1: i32) -> (i32, i32) {
    %c0_i32 = arith.constant 0 : i32
    return %arg0, %arg1 : i32, i32
  }
  func.func @transform_2(%arg0: i32, %arg1: i32) -> (i32, i32, i32) {
    %c0_i32 = arith.constant 0 : i32
    %c0_i32_0 = arith.constant 0 : i32
    %c0_i32_1 = arith.constant 0 : i32
    return %arg0, %c0_i32, %c0_i32_0 : i32, i32, i32
  }
}

</mosaic_0001>

<llo_original>
// kernel: tpu_custom_call.1
$region0: #{tpu_custom_call.1}
  #allocation0 [shape = 'u32[]', space=smem, size = 0x4, offset = 0x4, fixed_abs, tag = 'smem constant byte address 0x4 - core index']
  #allocation1 [shape = 'u32[72,128]{1,0:T(1,128)}', space=vmem, size = 0x9000, scoped, tag = 'internal scratch']
  #allocation2 [shape = 'f32[8,128]{1,0:T(8,128)}', space=vmem, size = 0x1000, scoped, tag = 'scratch operand']
  %s0 = inlined_call_operand.hbm [shape: f32[8,1024], index: 0, kind: input, shape index: {}]
  %s1 = inlined_call_operand.hbm [shape: f32[8,1024], index: 1, kind: input, shape index: {}]
  %s2 = inlined_call_operand.hbm [shape: f32[1,8,128], index: 2, kind: output, shape index: {}]
  %s3 = sld [smem:[#allocation0]]
  $region34: #{tpu_custom_call.1} parent=0
    _
  %s5 = ssub.s32 1, %s3
  %s6 = scalar_select 0, %s5, %s3
  $region1: #{tpu_custom_call.1} parent=0
    #allocation3 [shape = 'u8[32768]{0}', space=vmem, size = 0x8000, scoped, tag = 'input window, operand 0, single buffered']
    #allocation4 [shape = 's32[1]{0}', space=sflag, size = 0x4, scoped, tag = 'scoped memory for tpu_custom_call.1']
    #allocation5 [shape = 's32[1]{0}', space=sflag, size = 0x4, scoped, tag = 'scoped memory for tpu_custom_call.1']
    #allocation6 [shape = 'u8[32768]{0}', space=vmem, size = 0x8000, scoped, tag = 'input window, operand 1, single buffered']
    #allocation7 [shape = 's32[1]{0}', space=sflag, size = 0x4, scoped, tag = 'scoped memory for tpu_custom_call.1']
    #allocation8 [shape = 'u8[4096]{0}', space=vmem, size = 0x1000, scoped, tag = 'output window, operand 0, single buffered']
    %7 = vsyncpa [#allocation4], 0
    %8 = vsyncpa [#allocation7], 0
    %9 = vsyncpa [#allocation5], 0
    // Predicated region
    $region2: #{tpu_custom_call.1} parent=1 // pred_check
      _
    $region3: #{tpu_custom_call.1} parent=1 // pred_check_branch
      %11 = sbr.rel (0) target = $region5
    $region4: #{tpu_custom_call.1} parent=1 // pred_region
      %13 = vsyncadd [#allocation4], 0
      %s15 = sshll.u32 %s0, 4
      %s16 = int_to_ptr.hbm [resolvable:$true] %s15
      %s17 = sshll.u32 [#allocation3], 4
      %s18 = int_to_ptr.vmem [resolvable:$true] %s17
      %20 = dma.hbm_to_vmem [thread:$0]  %s16, 1024, %s18, [#allocation4]
    $region5: #{tpu_custom_call.1} parent=1 // pred_fallthru
      _
    // Predicated region
    $region6: #{tpu_custom_call.1} parent=1 // pred_check
      _
    $region7: #{tpu_custom_call.1} parent=1 // pred_check_branch
      %22 = sbr.rel (0) target = $region9
    $region8: #{tpu_custom_call.1} parent=1 // pred_region
      %24 = vsyncadd [#allocation7], 0
      %s26 = sshll.u32 %s1, 4
      %s27 = int_to_ptr.hbm [resolvable:$true] %s26
      %s28 = sshll.u32 [#allocation6], 4
      %s29 = int_to_ptr.vmem [resolvable:$true] %s28
      %31 = dma.hbm_to_vmem [thread:$0]  %s27, 1024, %s29, [#allocation7]
    $region9: #{tpu_custom_call.1} parent=1 // pred_fallthru
      _
    // Predicated region
    $region10: #{tpu_custom_call.1} parent=1 // pred_check
      _
    $region11: #{tpu_custom_call.1} parent=1 // pred_check_branch
      %33 = sbr.rel (0) target = $region13
    $region12: #{tpu_custom_call.1} parent=1 // pred_region
      %35 = dma.done [#allocation4], 1024
    $region13: #{tpu_custom_call.1} parent=1 // pred_fallthru
      _
    // Predicated region
    $region14: #{tpu_custom_call.1} parent=1 // pred_check
      _
    $region15: #{tpu_custom_call.1} parent=1 // pred_check_branch
      %37 = sbr.rel (0) target = $region17
    $region16: #{tpu_custom_call.1} parent=1 // pred_region
      %39 = dma.done [#allocation7], 1024
    $region17: #{tpu_custom_call.1} parent=1 // pred_fallthru
      _
    %p40 = scmp.eq.s32.totalorder 0, 0
    // Predicated region
    $region18: #{tpu_custom_call.1} parent=1 // pred_check
      %p41 = pneg %p40
    $region19: #{tpu_custom_call.1} parent=1 // pred_check_branch
      %43 = sbr.rel (%p41) target = $region21
    $region20: #{tpu_custom_call.1} parent=1 // pred_region
      %44 = vst [vmem:[#allocation2] sm:$0xff] 0.0
    $region21: #{tpu_custom_call.1} parent=1 // pred_fallthru
      _
    %v45 = vld [vmem:[#allocation3] sm:$0xff]
    %v46 = vld [vmem:[#allocation6] sm:$0xff]
    %v47 = vsub.f32 %v45, %v46
    %v48 = vmul.f32 %v47, %v47
    %v49 = vld [vmem:[#allocation3 + $0x8] sm:$0xff]
    %v50 = vld [vmem:[#allocation6 + $0x8] sm:$0xff]
    %v51 = vsub.f32 %v49, %v50
    %v52 = vmul.f32 %v51, %v51
    %v53 = vadd.f32 %v48, %v52
    %v54 = vld [vmem:[#allocation3 + $0x10] sm:$0xff]
    %v55 = vld [vmem:[#allocation6 + $0x10] sm:$0xff]
    %v56 = vsub.f32 %v54, %v55
    %v57 = vmul.f32 %v56, %v56
    %v58 = vadd.f32 %v53, %v57
    %v59 = vld [vmem:[#allocation3 + $0x18] sm:$0xff]
    %v60 = vld [vmem:[#allocation6 + $0x18] sm:$0xff]
    %v61 = vsub.f32 %v59, %v60
    %v62 = vmul.f32 %v61, %v61
    %v63 = vadd.f32 %v58, %v62
    %v64 = vld [vmem:[#allocation3 + $0x20] sm:$0xff]
    %v65 = vld [vmem:[#allocation6 + $0x20] sm:$0xff]
    %v66 = vsub.f32 %v64, %v65
    %v67 = vmul.f32 %v66, %v66
    %v68 = vadd.f32 %v63, %v67
    %v69 = vld [vmem:[#allocation3 + $0x28] sm:$0xff]
    %v70 = vld [vmem:[#allocation6 + $0x28] sm:$0xff]
    %v71 = vsub.f32 %v69, %v70
    %v72 = vmul.f32 %v71, %v71
    %v73 = vadd.f32 %v68, %v72
    %v74 = vld [vmem:[#allocation3 + $0x30] sm:$0xff]
    %v75 = vld [vmem:[#allocation6 + $0x30] sm:$0xff]
    %v76 = vsub.f32 %v74, %v75
    %v77 = vmul.f32 %v76, %v76
    %v78 = vadd.f32 %v73, %v77
    %v79 = vld [vmem:[#allocation3 + $0x38] sm:$0xff]
    %v80 = vld [vmem:[#allocation6 + $0x38] sm:$0xff]
    %v81 = vsub.f32 %v79, %v80
    %v82 = vmul.f32 %v81, %v81
    %v83 = vadd.f32 %v78, %v82
    %v84 = vld [vmem:[#allocation2] sm:$0xff]
    %v85 = vadd.f32 %v84, %v83
    %86 = vst [vmem:[#allocation2] sm:$0xff] %v85
    // Predicated region
    $region22: #{tpu_custom_call.1} parent=1 // pred_check
      %p87 = pneg %p40
    $region23: #{tpu_custom_call.1} parent=1 // pred_check_branch
      %89 = sbr.rel (%p87) target = $region25
    $region24: #{tpu_custom_call.1} parent=1 // pred_region
      %v90 = vld [vmem:[#allocation2] sm:$0xff]
      %91 = vadd.xlane.f32.xlu0 %v90
      %v92 = vpop.xlane.xlu0 %91
      %v93 = vmul.f32 %v92, 0.0009765625
      %v94 = vlaneseq
      %v95 = vshrl.u32 %v94, 7
      %s96 = smul.u32 0, 8
      %v97 = vstv %s96
      %v98 = vadd.s32 %v95, %v97
      %v99 = vadd.s32 %v98, 1
      %v100 = vcvt.s32.f32 %v99
      %v101 = vmul.f32 %v100, -0.010050336
      %v102 = vmul.f32 %v101, 1.442695
      %v103 = vpow.pop %v102
      %v104 = vmul.f32 %v93, %v103
      %vm105 = vcmask 7168
      %v106 = vsel %vm105, %v104, 0.0
      %107 = vadd.xlane.f32.xlu0 %v106
      %v108 = vpop.xlane.xlu0 %107
      %v109 = vrot.slane %v108, 4
      %v110 = vadd.f32 %v108, %v109
      %v111 = vrot.slane %v110, 2
      %v112 = vadd.f32 %v110, %v111
      %v113 = vrot.slane %v112, 1
      %v114 = vadd.f32 %v112, %v113
      %s115 = vtos %v114
      %v116 = vstv %s115
      %117 = vst [vmem:[#allocation8] sm:$0xff] %v116
    $region25: #{tpu_custom_call.1} parent=1 // pred_fallthru
      _
    // Predicated region
    $region26: #{tpu_custom_call.1} parent=1 // pred_check
      _
    $region27: #{tpu_custom_call.1} parent=1 // pred_check_branch
      %119 = sbr.rel (0) target = $region29
    $region28: #{tpu_custom_call.1} parent=1 // pred_region
      %121 = vsyncadd [#allocation5], 0
      %s123 = sshll.u32 [#allocation8], 4
      %s124 = int_to_ptr.vmem [resolvable:$true] %s123
      %s125 = sshll.u32 %s2, 4
      %s126 = int_to_ptr.hbm [resolvable:$true] %s125
      %128 = dma.vmem_to_hbm [thread:$0]  %s124, 128, %s126, [#allocation5]
    $region29: #{tpu_custom_call.1} parent=1 // pred_fallthru
      _
    // Predicated region
    $region30: #{tpu_custom_call.1} parent=1 // pred_check
      _
    $region31: #{tpu_custom_call.1} parent=1 // pred_check_branch
      %130 = sbr.rel (0) target = $region33
    $region32: #{tpu_custom_call.1} parent=1 // pred_region
      %132 = dma.done [#allocation5], 128
    $region33: #{tpu_custom_call.1} parent=1 // pred_fallthru
      _
    %133 = vsyncpa [#allocation4], 1
    %134 = vsyncpa [#allocation7], 1
    %135 = vsyncpa [#allocation5], 1

</llo_original>
